<compile_context>
chip_gen: v6e
topology: v6e:2x2x1
jax: 0.10.0
libtpu: 0.0.40
codegen_flags: <defaults>
</compile_context>

<pallas_src>
import functools

import jax
import jax.numpy as jnp
from jax.experimental import pallas as pl
from jax.experimental.pallas import tpu as pltpu

LN_EPS = 1e-5                      # torch.nn.LayerNorm default eps


# ----------------------- hardware-aware global defaults ----------------------

def _tpu_vmem_capacity_bytes():
    try:
        info = pltpu.get_tpu_info()
        cap = getattr(info, "vmem_capacity_bytes", None)
        if cap:
            return int(cap)
    except Exception:
        pass
    return 64 * 1024 * 1024        # conservative: v7x per-TensorCore VMEM


_VMEM_CAP = _tpu_vmem_capacity_bytes()
# Leave headroom for compiler-internal scratch: ~96 MiB on 128 MiB parts (v5e/v6e),
# ~48 MiB on 64 MiB parts (v7x).
VMEM_LIMIT = int(min(_VMEM_CAP * 3 // 4, 96 * 1024 * 1024))
# Token tile: large enough that the per-M-tile weight re-stream is MXU-bound on v6e,
# smaller on v7x (half the VMEM, 2.4x the HBM bandwidth).
TM_DEFAULT = 768 if _VMEM_CAP >= (100 << 20) else 512


# ----------------------------- small helpers --------------------------------

def _round_up(a, b):
    return -(-a // b) * b


def _pick_tile(dim, want, align):
    """Largest multiple of `align` that divides `dim` and is <= `want` (else full dim)."""
    if dim <= want or dim % align != 0:
        return dim
    t = (want // align) * align
    while t > align and dim % t != 0:
        t -= align
    return t if (t >= align and dim % t == 0) else dim


def _pad_rows(a, rows):
    pad = rows - a.shape[0]
    return a if pad == 0 else jnp.pad(a, ((0, pad), (0, 0)))


def _tm_and_padded_rows(m, tm):
    """Token tile + padded row count.  Prefers a tile that divides M exactly so the
    pad/slice HBM copies vanish for the (overwhelmingly common) M % 8 == 0 case."""
    if m % 8 == 0:
        return _pick_tile(m, tm, 8), m
    # TODO(synk): ragged M (not a multiple of 8) still pays one pad + one slice per kernel.
    tm_eff = min(tm, _round_up(m, 8))
    return tm_eff, _round_up(m, tm_eff)


def _seq_tile(s, want):
    return _pick_tile(s, want, 128) if s % 128 == 0 else _pick_tile(s, want, 8)


def _layer_norm_f32(x, g, b, eps):
    x = x.astype(jnp.float32)
    mu = jnp.mean(x, axis=-1, keepdims=True)
    xc = x - mu
    var = jnp.mean(xc * xc, axis=-1, keepdims=True)
    return xc * jax.lax.rsqrt(var + eps) * g.astype(jnp.float32) + b.astype(jnp.float32)


# --------------------- kernel 1: LayerNorm(x) @ W (QKV) ---------------------

def _prenorm_matmul_kernel(x_ref, g_ref, b_ref, w_ref, o_ref, xn_ref, *, eps):
    @pl.when(pl.program_id(1) == 0)
    def _():
        # LN computed once per token tile (x block is resident across the N axis).
        xn_ref[...] = _layer_norm_f32(x_ref[...], g_ref[...], b_ref[...], eps
                                      ).astype(xn_ref.dtype)

    o_ref[...] = jnp.dot(xn_ref[...], w_ref[...].astype(xn_ref.dtype),
                         preferred_element_type=jnp.float32).astype(o_ref.dtype)


def prenorm_matmul(x2, gamma, beta, w, *, eps=LN_EPS, tm=TM_DEFAULT, tn=512,
                   compute_dtype=jnp.bfloat16):
    """LayerNorm(x2) @ w ; x2: (M, D), w: (D, N) -> (M, N)."""
    M, D = x2.shape
    N = w.shape[1]
    tm_eff, Mp = _tm_and_padded_rows(M, tm)
    tn_eff = _pick_tile(N, tn, 128)
    xp = _pad_rows(x2, Mp)
    itemsize = jnp.dtype(x2.dtype).itemsize
    cost = pl.CostEstimate(
        flops=2 * Mp * D * N + 10 * Mp * D,
        transcendentals=Mp,
        bytes_accessed=(Mp * D + Mp * N + 2 * D + (Mp // tm_eff) * D * N) * itemsize)
    out = pl.pallas_call(
        functools.partial(_prenorm_matmul_kernel, eps=eps),
        out_shape=jax.ShapeDtypeStruct((Mp, N), x2.dtype),
        grid_spec=pltpu.PrefetchScalarGridSpec(
            num_scalar_prefetch=0,
            grid=(Mp // tm_eff, N // tn_eff),
            in_specs=[
                pl.BlockSpec((tm_eff, D), lambda i, j: (i, 0)),   # x tile (resident over j)
                pl.BlockSpec((1, D), lambda i, j: (0, 0)),        # LN gamma
                pl.BlockSpec((1, D), lambda i, j: (0, 0)),        # LN beta
                pl.BlockSpec((D, tn_eff), lambda i, j: (0, j)),   # W column block
            ],
            out_specs=pl.BlockSpec((tm_eff, tn_eff), lambda i, j: (i, j)),
            scratch_shapes=[pltpu.VMEM((tm_eff, D), compute_dtype)],   # cached LN(x)
        ),
        compiler_params=pltpu.CompilerParams(
            dimension_semantics=("parallel", "arbitrary"),
            vmem_limit_bytes=VMEM_LIMIT),
        cost_estimate=cost,
    )(xp, gamma.reshape(1, D), beta.reshape(1, D), w)
    return out[:M]


# ---------------- kernel 2: flash attention over fused QKV -------------------

def _flash_attn_kernel(q_ref, k_ref, v_ref, o_ref, m_ref, l_ref, acc_ref,
                       *, heads, dim_head, scale, compute_dtype, approx_recip):
    ki = pl.program_id(2)

    @pl.when(ki == 0)
    def _():
        m_ref[...] = jnp.full_like(m_ref, -jnp.inf)
        l_ref[...] = jnp.zeros_like(l_ref)
        acc_ref[...] = jnp.zeros_like(acc_ref)

    q = q_ref[...].astype(compute_dtype)      # (tq, heads*dh)
    k = k_ref[...].astype(compute_dtype)      # (tk, heads*dh)
    v = v_ref[...].astype(compute_dtype)      # (tk, heads*dh)

    # TODO(synk): move the head loop into the grid (and 2-heads-per-matmul packing) once
    #             dim_head % 128 == 0 so the per-head column window obeys the lane rule.
    for h in range(heads):
        sl = slice(h * dim_head, (h + 1) * dim_head)
        s = jax.lax.dot_general(q[:, sl], k[:, sl], (((1,), (1,)), ((), ())),
                                preferred_element_type=jnp.float32) * scale   # (tq, tk)
        m_prev = m_ref[:, h:h + 1]
        l_prev = l_ref[:, h:h + 1]
        m_new = jnp.maximum(m_prev, jnp.max(s, axis=-1, keepdims=True))
        alpha = jnp.exp(m_prev - m_new)                    # (tq, 1)
        p = jnp.exp(s - m_new)                             # (tq, tk)
        l_ref[:, h:h + 1] = alpha * l_prev + jnp.sum(p, axis=-1, keepdims=True)
        acc_ref[:, sl] = alpha * acc_ref[:, sl] + jnp.dot(
            p.astype(compute_dtype), v[:, sl], preferred_element_type=jnp.float32)
        m_ref[:, h:h + 1] = m_new

    @pl.when(ki == pl.num_programs(2) - 1)
    def _():
        inv = pl.reciprocal(l_ref[...], approx=approx_recip)    # (tq, heads); EUP when approx
        for h in range(heads):
            sl = slice(h * dim_head, (h + 1) * dim_head)
            acc_ref[:, sl] = acc_ref[:, sl] * inv[:, h:h + 1]
        o_ref[...] = acc_ref[...].astype(o_ref.dtype)           # single lane-dense store


def flash_attention(qkv, *, batch, seq, heads, dim_head, scale,
                    tq=256, tk=512, compute_dtype=jnp.bfloat16):
    """softmax(q k^T * scale) v for all heads.  qkv: (B*S, 3*heads*dim_head) fused buffer,
    columns laid out as [q_h0..q_hH, k_h0.., v_h0..].  Returns (B*S, heads*dim_head)."""
    B, S = batch, seq
    inner = heads * dim_head
    assert qkv.shape == (B * S, 3 * inner)
    tq_eff = _seq_tile(S, tq)
    tk_eff = _seq_tile(S, tk)
    qkv3 = qkv.reshape(B, S, 3 * inner)

    if inner % 128 == 0:
        # Read q/k/v column windows straight out of the fused QKV buffer: no split/transpose.
        operands = (qkv3, qkv3, qkv3)
        in_specs = [
            pl.BlockSpec((None, tq_eff, inner), lambda b, qi, ki: (b, qi, 0)),
            pl.BlockSpec((None, tk_eff, inner), lambda b, qi, ki: (b, ki, 1)),
            pl.BlockSpec((None, tk_eff, inner), lambda b, qi, ki: (b, ki, 2)),
        ]
    else:
        # Lane rule (last block dim % 128 or == full dim) forbids a sub-128 column window:
        # fall back to a single split (still no head transposes).
        q, k, v = jnp.split(qkv3, 3, axis=-1)
        operands = (q, k, v)
        in_specs = [
            pl.BlockSpec((None, tq_eff, inner), lambda b, qi, ki: (b, qi, 0)),
            pl.BlockSpec((None, tk_eff, inner), lambda b, qi, ki: (b, ki, 0)),
            pl.BlockSpec((None, tk_eff, inner), lambda b, qi, ki: (b, ki, 0)),
        ]

    itemsize = jnp.dtype(qkv.dtype).itemsize
    cost = pl.CostEstimate(
        flops=4 * B * heads * S * S * dim_head,
        transcendentals=B * heads * S * S,
        bytes_accessed=(2 * B * S * inner + (S // tq_eff) * B * S * 2 * inner) * itemsize)

    approx = jnp.dtype(compute_dtype) != jnp.dtype(jnp.float32)
    out = pl.pallas_call(
        functools.partial(_flash_attn_kernel, heads=heads, dim_head=dim_head,
                          scale=scale, compute_dtype=compute_dtype, approx_recip=approx),
        out_shape=jax.ShapeDtypeStruct((B, S, inner), qkv.dtype),
        grid_spec=pltpu.PrefetchScalarGridSpec(
            num_scalar_prefetch=0,
            grid=(B, S // tq_eff, S // tk_eff),
            in_specs=in_specs,
            out_specs=pl.BlockSpec((None, tq_eff, inner), lambda b, qi, ki: (b, qi, 0)),
            scratch_shapes=[
                pltpu.VMEM((tq_eff, heads), jnp.float32),   # running max per head
                pltpu.VMEM((tq_eff, heads), jnp.float32),   # running sum per head
                pltpu.VMEM((tq_eff, inner), jnp.float32),   # f32 output accumulator
            ],
        ),
        compiler_params=pltpu.CompilerParams(
            dimension_semantics=("parallel", "parallel", "arbitrary"),
            vmem_limit_bytes=VMEM_LIMIT),
        cost_estimate=cost,
    )(*operands)
    return out.reshape(B * S, inner)


# -------------- kernel 3: a @ W + b + residual (out-projection) --------------

def _matmul_bias_res_kernel(a_ref, w_ref, b_ref, r_ref, o_ref, *, compute_dtype):
    acc = jnp.dot(a_ref[...].astype(compute_dtype), w_ref[...].astype(compute_dtype),
                  preferred_element_type=jnp.float32)
    o_ref[...] = (acc + b_ref[...].astype(jnp.float32)
                  + r_ref[...].astype(jnp.float32)).astype(o_ref.dtype)


def matmul_bias_residual(a, w, b, residual, *, tm=TM_DEFAULT, tn=512,
                         compute_dtype=jnp.bfloat16):
    """a @ w + b + residual ; a: (M, K), w: (K, N), residual: (M, N)."""
    M, K = a.shape
    N = w.shape[1]
    tm_eff, Mp = _tm_and_padded_rows(M, tm)
    tn_eff = _pick_tile(N, tn, 128)
    ap = _pad_rows(a, Mp)
    rp = _pad_rows(residual, Mp)
    itemsize = jnp.dtype(a.dtype).itemsize
    cost = pl.CostEstimate(
        flops=2 * Mp * K * N,
        transcendentals=0,
        bytes_accessed=(Mp * K + 2 * Mp * N + N + (Mp // tm_eff) * K * N) * itemsize)
    out = pl.pallas_call(
        functools.partial(_matmul_bias_res_kernel, compute_dtype=compute_dtype),
        out_shape=jax.ShapeDtypeStruct((Mp, N), a.dtype),
        grid_spec=pltpu.PrefetchScalarGridSpec(
            num_scalar_prefetch=0,
            grid=(Mp // tm_eff, N // tn_eff),
            in_specs=[
                pl.BlockSpec((tm_eff, K), lambda i, j: (i, 0)),       # attention output tile
                pl.BlockSpec((K, tn_eff), lambda i, j: (0, j)),       # Wo block
                pl.BlockSpec((1, tn_eff), lambda i, j: (0, j)),       # bo block
                pl.BlockSpec((tm_eff, tn_eff), lambda i, j: (i, j)),  # residual tile
            ],
            out_specs=pl.BlockSpec((tm_eff, tn_eff), lambda i, j: (i, j)),
        ),
        compiler_params=pltpu.CompilerParams(
            dimension_semantics=("parallel", "parallel"),
            vmem_limit_bytes=VMEM_LIMIT),
        cost_estimate=cost,
    )(ap, w, b.reshape(1, N), rp)
    return out[:M]


# ------------ kernel 4: fused PreNorm + FeedForward + residual ---------------

def _prenorm_ffn_kernel(x_ref, g_ref, bt_ref, w1_ref, b1_ref, w2_ref, b2_ref,
                        o_ref, xn_ref, acc_ref, *, eps, compute_dtype):
    j = pl.program_id(1)                     # hidden-dim (reduction) axis, last in grid

    @pl.when(j == 0)
    def _():
        x = x_ref[...].astype(jnp.float32)
        xn_ref[...] = _layer_norm_f32(x, g_ref[...], bt_ref[...], eps).astype(xn_ref.dtype)
        # accumulator starts with the residual and the second Linear's bias
        acc_ref[...] = x + b2_ref[...].astype(jnp.float32)

    h = jnp.dot(xn_ref[...], w1_ref[...].astype(xn_ref.dtype),
                preferred_element_type=jnp.float32) + b1_ref[...].astype(jnp.float32)
    h = jax.nn.gelu(h, approximate=False)    # exact erf GELU == torch.nn.GELU() default
    # Dropout(p=0.0) -> identity
    acc_ref[...] += jnp.dot(h.astype(compute_dtype), w2_ref[...].astype(compute_dtype),
                            preferred_element_type=jnp.float32)

    @pl.when(j == pl.num_programs(1) - 1)
    def _():
        o_ref[...] = acc_ref[...].astype(o_ref.dtype)


def prenorm_ffn(x2, gamma, beta, w1, b1, w2, b2, *, eps=LN_EPS, tm=TM_DEFAULT, th=512,
                compute_dtype=jnp.bfloat16):
    """x2 + FFN(LayerNorm(x2)); x2: (M, D), w1: (D, H), w2: (H, D)."""
    M, D = x2.shape
    H = w1.shape[1]
    tm_eff, Mp = _tm_and_padded_rows(M, tm)
    th_eff = _pick_tile(H, th, 128)
    xp = _pad_rows(x2, Mp)
    itemsize = jnp.dtype(x2.dtype).itemsize
    cost = pl.CostEstimate(
        flops=4 * Mp * D * H + 12 * Mp * D + 8 * Mp * H,
        transcendentals=Mp * H + Mp,
        bytes_accessed=(2 * Mp * D + H + 3 * D + (Mp // tm_eff) * 2 * D * H) * itemsize)
    out = pl.pallas_call(
        functools.partial(_prenorm_ffn_kernel, eps=eps, compute_dtype=compute_dtype),
        out_shape=jax.ShapeDtypeStruct((Mp, D), x2.dtype),
        grid_spec=pltpu.PrefetchScalarGridSpec(
            num_scalar_prefetch=0,
            grid=(Mp // tm_eff, H // th_eff),
            in_specs=[
                pl.BlockSpec((tm_eff, D), lambda i, j: (i, 0)),     # x tile (resident over j)
                pl.BlockSpec((1, D), lambda i, j: (0, 0)),          # LN gamma
                pl.BlockSpec((1, D), lambda i, j: (0, 0)),          # LN beta
                pl.BlockSpec((D, th_eff), lambda i, j: (0, j)),     # W1 column block
                pl.BlockSpec((1, th_eff), lambda i, j: (0, j)),     # b1 block
                pl.BlockSpec((th_eff, D), lambda i, j: (j, 0)),     # W2 row block
                pl.BlockSpec((1, D), lambda i, j: (0, 0)),          # b2
            ],
            out_specs=pl.BlockSpec((tm_eff, D), lambda i, j: (i, 0)),
            scratch_shapes=[
                pltpu.VMEM((tm_eff, D), compute_dtype),   # LN(x) cached across hidden steps
                pltpu.VMEM((tm_eff, D), jnp.float32),     # f32 accumulator (residual + out)
            ],
        ),
        compiler_params=pltpu.CompilerParams(
            dimension_semantics=("parallel", "arbitrary"),          # reduction axis last
            vmem_limit_bytes=VMEM_LIMIT),
        cost_estimate=cost,
    )(xp, gamma.reshape(1, D), beta.reshape(1, D), w1, b1.reshape(1, H), w2, b2.reshape(1, D))
    return out[:M]


# --------------------------- module-level wrappers ---------------------------

def attention_block(x, p, *, heads, dim_head, tm, compute_dtype):
    """x + Attention(LayerNorm(x)) for one layer; x: (B, S, D)."""
    B, S, D = x.shape
    M = B * S
    x2 = x.reshape(M, D)
    qkv = prenorm_matmul(x2, p["ln_g"], p["ln_b"], p["w_qkv"],
                         tm=tm, compute_dtype=compute_dtype)          # (M, 3*inner)
    o = flash_attention(qkv, batch=B, seq=S, heads=heads, dim_head=dim_head,
                        scale=dim_head ** -0.5, compute_dtype=compute_dtype)   # (M, inner)
    if p["w_o"] is not None:
        y2 = matmul_bias_residual(o, p["w_o"], p["b_o"], x2,
                                  tm=tm, compute_dtype=compute_dtype)
    else:
        # project_out == False (heads == 1 and dim_head == dim): to_out is nn.Identity().
        y2 = o + x2   # TODO(synk): trivial residual add left to XLA for this corner case
    return y2.reshape(B, S, D)


def ffn_block(x, p, *, tm, compute_dtype):
    B, S, D = x.shape
    y2 = prenorm_ffn(x.reshape(B * S, D), p["ln_g"], p["ln_b"],
                     p["w1"], p["b1"], p["w2"], p["b2"],
                     tm=tm, compute_dtype=compute_dtype)
    return y2.reshape(B, S, D)


def transformer_forward(x, params, *, heads, dim_head, tm=TM_DEFAULT,
                        compute_dtype=jnp.bfloat16):
    """Pallas implementation of Transformer.forward (bf16 MXU compute, f32 accumulation)."""
    for layer in params:
        x = attention_block(x, layer["attn"], heads=heads, dim_head=dim_head,
                            tm=tm, compute_dtype=compute_dtype)
        x = ffn_block(x, layer["ffn"], tm=tm, compute_dtype=compute_dtype)
    return x


# ------------------------------ pure-JAX reference ---------------------------

def _layer_norm_ref(x, g, b, eps=LN_EPS):
    mu = jnp.mean(x, -1, keepdims=True)
    var = jnp.mean((x - mu) ** 2, -1, keepdims=True)
    return (x - mu) * jax.lax.rsqrt(var + eps) * g + b


def transformer_ref(x, params, *, heads, dim_head):
    B, S, _ = x.shape
    for layer in params:
        a = layer["attn"]
        xn = _layer_norm_ref(x, a["ln_g"], a["ln_b"])
        qkv = jnp.einsum("bsd,de->bse", xn, a["w_qkv"])
        q, k, v = jnp.split(qkv, 3, axis=-1)
        sh = lambda t: t.reshape(B, S, heads, dim_head).transpose(0, 2, 1, 3)
        q, k, v = sh(q), sh(k), sh(v)
        dots = jnp.einsum("bhqd,bhkd->bhqk", q, k) * (dim_head ** -0.5)
        attn = jax.nn.softmax(dots, axis=-1)
        o = jnp.einsum("bhqk,bhkd->bhqd", attn, v)
        o = o.transpose(0, 2, 1, 3).reshape(B, S, heads * dim_head)
        if a["w_o"] is not None:
            o = jnp.einsum("bse,ed->bsd", o, a["w_o"]) + a["b_o"]
        x = o + x
        f = layer["ffn"]
        xn = _layer_norm_ref(x, f["ln_g"], f["ln_b"])
        h = jax.nn.gelu(jnp.einsum("bsd,dh->bsh", xn, f["w1"]) + f["b1"], approximate=False)
        x = jnp.einsum("bsh,hd->bsd", h, f["w2"]) + f["b2"] + x
    return x


# ------------------------------ parameter init -------------------------------

def init_params(key, *, dim, depth, heads, dim_head, mlp_dim, dtype=jnp.float32):
    inner = heads * dim_head
    project_out = not (heads == 1 and dim_head == dim)
    params = []
    for _ in range(depth):
        key, *ks = jax.random.split(key, 12)
        attn = dict(
            ln_g=1.0 + 0.05 * jax.random.normal(ks[0], (dim,), dtype),
            ln_b=0.05 * jax.random.normal(ks[1], (dim,), dtype),
            # nn.Linear weights stored pre-transposed (in, out) so kernels compute x @ W.
            w_qkv=0.05 * jax.random.normal(ks[2], (dim, 3 * inner), dtype),   # bias=False
            w_o=(0.05 * jax.random.normal(ks[3], (inner, dim), dtype)) if project_out else None,
            b_o=(0.05 * jax.random.normal(ks[4], (dim,), dtype)) if project_out else None,
        )
        ffn = dict(
            ln_g=1.0 + 0.05 * jax.random.normal(ks[5], (dim,), dtype),
            ln_b=0.05 * jax.random.normal(ks[6], (dim,), dtype),
            w1=0.05 * jax.random.normal(ks[7], (dim, mlp_dim), dtype),
            b1=0.05 * jax.random.normal(ks[8], (mlp_dim,), dtype),
            w2=0.05 * jax.random.normal(ks[9], (mlp_dim, dim), dtype),
            b2=0.05 * jax.random.normal(ks[10], (dim,), dtype),
        )
        params.append(dict(attn=attn, ffn=ffn))
    return params


# ------------------------------------ demo -----------------------------------

if __name__ == "__main__":
    B, S = 2, 8
    dim, depth, heads, dim_head, mlp_dim = 32, 2, 4, 8, 64

    key = jax.random.PRNGKey(0)
    kx, kp = jax.random.split(key)
    x = jax.random.normal(kx, (B, S, dim), dtype=jnp.float32)
    params = init_params(kp, dim=dim, depth=depth, heads=heads,
                         dim_head=dim_head, mlp_dim=mlp_dim)

    y_ref = transformer_ref(x, params, heads=heads, dim_head=dim_head)

    # Production path: bf16 MXU compute with f32 accumulation (loose tolerance).
    y_bf16 = transformer_forward(x, params, heads=heads, dim_head=dim_head)
    y_bf16 = jax.block_until_ready(y_bf16)
    assert y_bf16.shape == (B, S, dim)
    err_bf16 = float(jnp.max(jnp.abs(y_bf16 - y_ref)))
    assert jnp.allclose(y_bf16, y_ref, atol=5e-2, rtol=5e-2), \
        f"bf16 path mismatch vs reference (max |err|={err_bf16})"

    # Verification path: f32 compute, tight tolerance (only accumulation-order differences).
    y_f32 = transformer_forward(x, params, heads=heads, dim_head=dim_head,
                                compute_dtype=jnp.float32)
    y_f32 = jax.block_until_ready(y_f32)
    err_f32 = float(jnp.max(jnp.abs(y_f32 - y_ref)))
    assert jnp.allclose(y_f32, y_ref, atol=2e-3, rtol=2e-3), \
        f"f32 path mismatch vs reference (max |err|={err_f32})"

    print("KERNEL_OK")
</pallas_src>

<mosaic_0001>
module attributes {stable_mosaic.version = 11 : i64} {
  func.func @_prenorm_matmul_kernel(%arg0: i32, %arg1: i32, %arg2: memref<16x32xf32, #tpu.memory_space<vmem>>, %arg3: memref<1x32xf32, #tpu.memory_space<vmem>>, %arg4: memref<1x32xf32, #tpu.memory_space<vmem>>, %arg5: memref<32x96xf32, #tpu.memory_space<vmem>>, %arg6: memref<16x96xf32, #tpu.memory_space<vmem>>, %arg7: memref<16x32xbf16, #tpu.memory_space<vmem>>) attributes {dimension_semantics = [#tpu.dimension_semantics<parallel>, #tpu.dimension_semantics<arbitrary>], iteration_bounds = array<i64: 1, 1>, scalar_prefetch = 0 : i64, scratch_operands = 1 : i64, tpu.core_type = #tpu.core_type<tc>, window_params = [{transform_indices = @transform_0, window_bounds = array<i64: 16, 32>}, {pipeline_mode = #tpu.pipeline_mode<synchronous>, transform_indices = @transform_1, window_bounds = array<i64: 1, 32>}, {pipeline_mode = #tpu.pipeline_mode<synchronous>, transform_indices = @transform_2, window_bounds = array<i64: 1, 32>}, {transform_indices = @transform_3, window_bounds = array<i64: 32, 96>}, {transform_indices = @transform_4, window_bounds = array<i64: 16, 96>}]} {
    %c0_i32 = arith.constant 0 : i32
    %0 = arith.cmpi eq, %arg1, %c0_i32 : i32
    %1 = arith.extui %0 : i1 to i32
    %c0_i32_0 = arith.constant 0 : i32
    %2 = arith.cmpi ne, %1, %c0_i32_0 : i32
    scf.if %2 {
      %c0_6 = arith.constant 0 : index
      %c0_7 = arith.constant 0 : index
      %8 = vector.load %arg2[%c0_6, %c0_7] : memref<16x32xf32, #tpu.memory_space<vmem>>, vector<16x32xf32>
      %c0_8 = arith.constant 0 : index
      %c0_9 = arith.constant 0 : index
      %9 = vector.load %arg3[%c0_8, %c0_9] : memref<1x32xf32, #tpu.memory_space<vmem>>, vector<1x32xf32>
      %c0_10 = arith.constant 0 : index
      %c0_11 = arith.constant 0 : index
      %10 = vector.load %arg4[%c0_10, %c0_11] : memref<1x32xf32, #tpu.memory_space<vmem>>, vector<1x32xf32>
      %cst_12 = arith.constant dense<0.000000e+00> : vector<16xf32>
      %11 = vector.multi_reduction <add>, %8, %cst_12 [1] : vector<16x32xf32> to vector<16xf32>
      %12 = vector.shape_cast %11 : vector<16xf32> to vector<16x1xf32>
      %cst_13 = arith.constant 3.200000e+01 : f32
      %13 = vector.broadcast %cst_13 : f32 to vector<16x1xf32>
      %14 = arith.divf %12, %13 : vector<16x1xf32>
      %15 = vector.broadcast %14 : vector<16x1xf32> to vector<16x32xf32>
      %16 = arith.subf %8, %15 : vector<16x32xf32>
      %17 = arith.mulf %16, %16 : vector<16x32xf32>
      %cst_14 = arith.constant dense<0.000000e+00> : vector<16xf32>
      %18 = vector.multi_reduction <add>, %17, %cst_14 [1] : vector<16x32xf32> to vector<16xf32>
      %19 = vector.shape_cast %18 : vector<16xf32> to vector<16x1xf32>
      %cst_15 = arith.constant 3.200000e+01 : f32
      %20 = vector.broadcast %cst_15 : f32 to vector<16x1xf32>
      %21 = arith.divf %19, %20 : vector<16x1xf32>
      %cst_16 = arith.constant 9.99999974E-6 : f32
      %22 = vector.broadcast %cst_16 : f32 to vector<16x1xf32>
      %23 = arith.addf %21, %22 : vector<16x1xf32>
      %24 = math.rsqrt %23 : vector<16x1xf32>
      %25 = vector.broadcast %24 : vector<16x1xf32> to vector<16x32xf32>
      %26 = arith.mulf %16, %25 : vector<16x32xf32>
      %27 = vector.broadcast %9 : vector<1x32xf32> to vector<16x32xf32>
      %28 = arith.mulf %26, %27 : vector<16x32xf32>
      %29 = vector.broadcast %10 : vector<1x32xf32> to vector<16x32xf32>
      %30 = arith.addf %28, %29 : vector<16x32xf32>
      %31 = arith.truncf %30 : vector<16x32xf32> to vector<16x32xbf16>
      %c0_17 = arith.constant 0 : index
      %c0_18 = arith.constant 0 : index
      %32 = vector.load %arg7[%c0_17, %c0_18] : memref<16x32xbf16, #tpu.memory_space<vmem>>, vector<16x32xbf16>
      tpu.vector_store %arg7[%c0_17, %c0_18], %31 {strides = array<i32>} : memref<16x32xbf16, #tpu.memory_space<vmem>>, vector<16x32xbf16>,
    } else {
    }
    %c0 = arith.constant 0 : index
    %c0_1 = arith.constant 0 : index
    %3 = vector.load %arg7[%c0, %c0_1] : memref<16x32xbf16, #tpu.memory_space<vmem>>, vector<16x32xbf16>
    %c0_2 = arith.constant 0 : index
    %c0_3 = arith.constant 0 : index
    %4 = vector.load %arg5[%c0_2, %c0_3] : memref<32x96xf32, #tpu.memory_space<vmem>>, vector<32x96xf32>
    %5 = arith.truncf %4 : vector<32x96xf32> to vector<32x96xbf16>
    %cst = arith.constant dense<0.000000e+00> : vector<16x96xf32>
    %6 = tpu.matmul %3, %5, %cst {dimension_numbers = #tpu.dot_dimension_numbers<[1], [0], [0], [1], [0, 0, 1, 1], [], []>} : vector<16x32xbf16>, vector<32x96xbf16>, vector<16x96xf32> -> vector<16x96xf32>
    %c0_4 = arith.constant 0 : index
    %c0_5 = arith.constant 0 : index
    %7 = vector.load %arg6[%c0_4, %c0_5] : memref<16x96xf32, #tpu.memory_space<vmem>>, vector<16x96xf32>
    tpu.vector_store %arg6[%c0_4, %c0_5], %6 {strides = array<i32>} : memref<16x96xf32, #tpu.memory_space<vmem>>, vector<16x96xf32>,
    return
  }
  func.func @transform_0(%arg0: i32, %arg1: i32) -> (i32, i32) {
    %c0_i32 = arith.constant 0 : i32
    %c0_i32_0 = arith.constant 0 : i32
    return %arg0, %c0_i32 : i32, i32
  }
  func.func @transform_1(%arg0: i32, %arg1: i32) -> (i32, i32) {
    %c0_i32 = arith.constant 0 : i32
    %c0_i32_0 = arith.constant 0 : i32
    %c0_i32_1 = arith.constant 0 : i32
    return %c0_i32, %c0_i32_0 : i32, i32
  }
  func.func @transform_2(%arg0: i32, %arg1: i32) -> (i32, i32) {
    %c0_i32 = arith.constant 0 : i32
    %c0_i32_0 = arith.constant 0 : i32
    %c0_i32_1 = arith.constant 0 : i32
    return %c0_i32, %c0_i32_0 : i32, i32
  }
  func.func @transform_3(%arg0: i32, %arg1: i32) -> (i32, i32) {
    %c0_i32 = arith.constant 0 : i32
    %c0_i32_0 = arith.constant 0 : i32
    return %c0_i32, %arg1 : i32, i32
  }
  func.func @transform_4(%arg0: i32, %arg1: i32) -> (i32, i32) {
    %c0_i32 = arith.constant 0 : i32
    return %arg0, %arg1 : i32, i32
  }
}

</mosaic_0001>

<llo_original>
// kernel: tpu_custom_call.1
$region0: #{tpu_custom_call.1}
  #allocation0 [shape = 'u32[]', space=smem, size = 0x4, offset = 0x4, fixed_abs, tag = 'smem constant byte address 0x4 - core index']
  #allocation1 [shape = 'u32[144,128]{1,0:T(1,128)}', space=vmem, size = 0x12000, scoped, tag = 'internal scratch']
  #allocation2 [shape = 'bf16[16,32]{1,0:T(8,128)(2,1)}', space=vmem, size = 0x1000, scoped, tag = 'scratch operand']
  %s0 = inlined_call_operand.hbm [shape: f32[16,32], index: 0, kind: input, shape index: {}]
  %s1 = inlined_call_operand.vmem [shape: f32[1,32], index: 1, kind: input, shape index: {}]
  %s2 = inlined_call_operand.vmem [shape: f32[1,32], index: 2, kind: input, shape index: {}]
  %s3 = inlined_call_operand.hbm [shape: f32[32,96], index: 3, kind: input, shape index: {}]
  %s4 = inlined_call_operand.hbm [shape: f32[16,96], index: 4, kind: output, shape index: {}]
  %s5 = sld [smem:[#allocation0]]
  $region38: #{tpu_custom_call.1} parent=0
    _
  %s7 = ssub.s32 1, %s5
  %s8 = scalar_select 0, %s7, %s5
  $region1: #{tpu_custom_call.1} parent=0
    #allocation3 [shape = 'u8[8192]{0}', space=vmem, size = 0x2000, scoped, tag = 'input window, operand 0, single buffered']
    #allocation4 [shape = 's32[1]{0}', space=sflag, size = 0x4, scoped, tag = 'scoped memory for tpu_custom_call.1']
    #allocation5 [shape = 's32[1]{0}', space=sflag, size = 0x4, scoped, tag = 'scoped memory for tpu_custom_call.1']
    #allocation6 [shape = 'u8[16384]{0}', space=vmem, size = 0x4000, scoped, tag = 'input window, operand 3, single buffered']
    #allocation7 [shape = 's32[1]{0}', space=sflag, size = 0x4, scoped, tag = 'scoped memory for tpu_custom_call.1']
    #allocation8 [shape = 'u8[8192]{0}', space=vmem, size = 0x2000, scoped, tag = 'output window, operand 0, single buffered']
    %9 = vsyncpa [#allocation4], 0
    %10 = vsyncpa [#allocation7], 0
    %11 = vsyncpa [#allocation5], 0
    // Predicated region
    $region2: #{tpu_custom_call.1} parent=1 // pred_check
      _
    $region3: #{tpu_custom_call.1} parent=1 // pred_check_branch
      %13 = sbr.rel (0) target = $region5
    $region4: #{tpu_custom_call.1} parent=1 // pred_region
      %s15 = ssub.s32 256, 256
      %16 = vsyncadd [#allocation4], %s15
      %s17 = sshll.u32 [#allocation3], 4
      %s18 = int_to_ptr.vmem [resolvable:$true] %s17
      %23 = dma.hbm_to_vmem [thread:$0]  %s0, 256, %s18, [#allocation4], 128, 128, 8
    $region5: #{tpu_custom_call.1} parent=1 // pred_fallthru
      _
    // Predicated region
    $region6: #{tpu_custom_call.1} parent=1 // pred_check
      _
    $region7: #{tpu_custom_call.1} parent=1 // pred_check_branch
      %25 = sbr.rel (0) target = $region9
    $region8: #{tpu_custom_call.1} parent=1 // pred_region
      _
    $region9: #{tpu_custom_call.1} parent=1 // pred_fallthru
      _
    // Predicated region
    $region10: #{tpu_custom_call.1} parent=1 // pred_check
      _
    $region11: #{tpu_custom_call.1} parent=1 // pred_check_branch
      %27 = sbr.rel (0) target = $region13
    $region12: #{tpu_custom_call.1} parent=1 // pred_region
      _
    $region13: #{tpu_custom_call.1} parent=1 // pred_fallthru
      _
    // Predicated region
    $region14: #{tpu_custom_call.1} parent=1 // pred_check
      _
    $region15: #{tpu_custom_call.1} parent=1 // pred_check_branch
      %29 = sbr.rel (0) target = $region17
    $region16: #{tpu_custom_call.1} parent=1 // pred_region
      %s31 = ssub.s32 512, 512
      %32 = vsyncadd [#allocation7], %s31
      %s33 = sshll.u32 [#allocation6], 4
      %s34 = int_to_ptr.vmem [resolvable:$true] %s33
      %39 = dma.hbm_to_vmem [thread:$0]  %s3, 512, %s34, [#allocation7], 128, 128, 8
    $region17: #{tpu_custom_call.1} parent=1 // pred_fallthru
      _
    // Predicated region
    $region18: #{tpu_custom_call.1} parent=1 // pred_check
      _
    $region19: #{tpu_custom_call.1} parent=1 // pred_check_branch
      %41 = sbr.rel (0) target = $region21
    $region20: #{tpu_custom_call.1} parent=1 // pred_region
      %42 = dma.done [#allocation4], 256
    $region21: #{tpu_custom_call.1} parent=1 // pred_fallthru
      _
    // Predicated region
    $region22: #{tpu_custom_call.1} parent=1 // pred_check
      _
    $region23: #{tpu_custom_call.1} parent=1 // pred_check_branch
      %44 = sbr.rel (0) target = $region25
    $region24: #{tpu_custom_call.1} parent=1 // pred_region
      %45 = dma.done [#allocation7], 512
    $region25: #{tpu_custom_call.1} parent=1 // pred_fallthru
      _
    %p47 = scmp.eq.s32.totalorder 0, 0
    // Predicated region
    $region26: #{tpu_custom_call.1} parent=1 // pred_check
      %p48 = pneg %p47
    $region27: #{tpu_custom_call.1} parent=1 // pred_check_branch
      %50 = sbr.rel (%p48) target = $region29
    $region28: #{tpu_custom_call.1} parent=1 // pred_region
      %v51 = vld [vmem:[#allocation3] sm:$0xff]
      %v52 = vld [vmem:[#allocation3 + $0x8] sm:$0xff]
      %v53 = vld [vmem:[%s1] sm:$0x1]
      %v54 = vld [vmem:[%s2] sm:$0x1]
      %vm55 = vcmask 261120
      %v56 = vsel %vm55, %v51, 0.0
      %57 = vadd.xlane.f32.xlu0 %v56
      %v58 = vpop.xlane.xlu0 %57
      %v59 = vsel %vm55, %v52, 0.0
      %60 = vadd.xlane.f32.xlu0 %v59
      %v61 = vpop.xlane.xlu0 %60
      %v62 = vrcp.pop 32.0
      %v63 = vmul.f32 %v58, %v62
      %v64 = vmul.f32 %v61, %v62
      %v65 = vsub.f32 %v51, %v63
      %v66 = vsub.f32 %v52, %v64
      %v67 = vmul.f32 %v65, %v65
      %v68 = vmul.f32 %v66, %v66
      %v69 = vsel %vm55, %v67, 0.0
      %70 = vadd.xlane.f32.xlu0 %v69
      %v71 = vpop.xlane.xlu0 %70
      %v72 = vsel %vm55, %v68, 0.0
      %73 = vadd.xlane.f32.xlu0 %v72
      %v74 = vpop.xlane.xlu0 %73
      %v75 = vmul.f32 %v71, %v62
      %v76 = vmul.f32 %v74, %v62
      %v77 = vadd.f32 %v75, 1e-05
      %v78 = vadd.f32 %v76, 1e-05
      %v79 = vrsqrt.pop %v77
      %v80 = vrsqrt.pop %v78
      %v81 = vmul.f32 %v65, %v79
      %v82 = vmul.f32 %v66, %v80
      %v84 = vlaneseq
      %v85 = vshrl.u32 %v84, 7
      %v86 = vsub.s32 0, %v85
      %v87 = vrot.slane %v53, %v86
      %v89 = vmul.f32 %v81, %v87
      %v90 = vmul.f32 %v82, %v87
      %v92 = vlaneseq
      %v93 = vshrl.u32 %v92, 7
      %v94 = vsub.s32 0, %v93
      %v95 = vrot.slane %v54, %v94
      %v97 = vadd.f32 %v89, %v95
      %v98 = vadd.f32 %v90, %v95
      %v99 = vpack.c.bf16 %v98, %v97
      %v101 = vunpack.c.l.b16 %v99
      %v102 = vunpack.c.h.b16 %v99
      %v103 = vpack.c.b16 %v101, %v101
      %v104 = vpack.c.b16 %v102, %v102
      %vm107 = vcmask 257024
      %108 = vst.msk [vmem:[#allocation2] sm:$0xf] %vm107, %v103
      %109 = vst.msk [vmem:[#allocation2 + $0x4] sm:$0xf] %vm107, %v104
    $region29: #{tpu_custom_call.1} parent=1 // pred_fallthru
      _
    %v110 = vld [vmem:[#allocation2] sm:$0xf]
    %v111 = vld [vmem:[#allocation2 + $0x4] sm:$0xf]
    %v112 = vld [vmem:[#allocation6] sm:$0xff]
    %v113 = vld [vmem:[#allocation6 + $0x8] sm:$0xff]
    %v114 = vld [vmem:[#allocation6 + $0x10] sm:$0xff]
    %v115 = vld [vmem:[#allocation6 + $0x18] sm:$0xff]
    %v116 = vpack.c.bf16 %v113, %v112
    %v117 = vpack.c.bf16 %v115, %v114
    %v120 = vunpack.c.l.b16 %v110
    %v121 = vunpack.c.l.b16 %v111
    %v122 = vpack.c.b16 %v121, %v120
    %vm123 = vcmask 261120
    %v125 = vsel %vm123, %v122, 0
    %127 = vmatprep.subr.bf16.mxu0 0
    %128 = vmatpush1.bf16.msra.mxu0 0
    %129 = vmatprep.subr.bf16.mxu0 0
    %130 = vmatpush1.bf16.msra.mxu0 0
    %131 = vmatprep.subr.bf16.mxu0 0
    %132 = vmatpush1.bf16.msra.mxu0 0
    %133 = vmatprep.subr.bf16.mxu0 0
    %134 = vmatpush1.bf16.msra.mxu0 0
    %135 = vmatprep.subr.bf16.mxu0 0
    %136 = vmatpush1.bf16.msra.mxu0 0
    %137 = vmatprep.subr.bf16.mxu0 0
    %138 = vmatpush1.bf16.msra.mxu0 0
    %139 = vmatprep.subr.bf16.mxu0 0
    %140 = vmatpush1.bf16.msra.mxu0 %v117
    %141 = vmatprep.subr.bf16.mxu0 0
    %142 = vmatpush1.bf16.msra.mxu0 %v116
    %143 = vmatprep.subr.bf16.mxu0 0
    %144 = vmatpush2.bf16.msra.mxu0 0
    %145 = vmatprep.subr.bf16.mxu0 0
    %146 = vmatpush2.bf16.msra.mxu0 0
    %147 = vmatprep.subr.bf16.mxu0 0
    %148 = vmatpush2.bf16.msra.mxu0 0
    %149 = vmatprep.subr.bf16.mxu0 0
    %150 = vmatpush2.bf16.msra.mxu0 0
    %151 = vmatprep.subr.bf16.mxu0 0
    %152 = vmatpush2.bf16.msra.mxu0 0
    %153 = vmatprep.subr.bf16.mxu0 0
    %154 = vmatpush2.bf16.msra.mxu0 0
    %155 = vmatprep.subr.bf16.mxu0 0
    %156 = vmatpush2.bf16.msra.mxu0 0
    %157 = vmatprep.subr.bf16.mxu0 0
    %158 = vmatpush2.bf16.msra.mxu0 0
    %159 = vmatprep.mubr.bf16.mxu0 0
    %160 = vmatmul.mubr.bf16.gmra.mxu0 %v125
    %v161 = vpop.f32.mrf.mxu0
    %v162 = vadd.f32 0.0, %v161
    %v163 = vpop.f32.mrf.mxu0
    %v164 = vpop.f32.mrf.mxu0
    %v165 = vadd.f32 0.0, %v164
    %v166 = vpop.f32.mrf.mxu0
    %167 = vdwg.mxu0
    %vm168 = vcmask 785408
    %169 = vst.msk [vmem:[#allocation8] sm:$0xff] %vm168, %v162
    %170 = vst.msk [vmem:[#allocation8 + $0x8] sm:$0xff] %vm168, %v165
    // Predicated region
    $region30: #{tpu_custom_call.1} parent=1 // pred_check
      _
    $region31: #{tpu_custom_call.1} parent=1 // pred_check_branch
      %172 = sbr.rel (0) target = $region33
    $region32: #{tpu_custom_call.1} parent=1 // pred_region
      %s174 = ssub.s32 256, 256
      %175 = vsyncadd [#allocation5], %s174
      %s176 = sshll.u32 [#allocation8], 4
      %s177 = int_to_ptr.vmem [resolvable:$true] %s176
      %182 = dma.vmem_to_hbm [thread:$0]  %s177, 256, %s4, [#allocation5], 128, 128, 8
    $region33: #{tpu_custom_call.1} parent=1 // pred_fallthru
      _
    // Predicated region
    $region34: #{tpu_custom_call.1} parent=1 // pred_check
      _
    $region35: #{tpu_custom_call.1} parent=1 // pred_check_branch
      %184 = sbr.rel (0) target = $region37
    $region36: #{tpu_custom_call.1} parent=1 // pred_region
      %185 = dma.done [#allocation5], 256
    $region37: #{tpu_custom_call.1} parent=1 // pred_fallthru
      _
    %186 = vsyncpa [#allocation4], 1
    %187 = vsyncpa [#allocation7], 1
    %188 = vsyncpa [#allocation5], 1

</llo_original>
